<compile_context>
chip_gen: v7x
topology: tpu7x:2x2x1
jax: 0.10.0
libtpu: 0.0.40
codegen_flags: <defaults>
</compile_context>

<pallas_src>
import jax
import jax.numpy as jnp
from jax.experimental import pallas as pl
from jax.experimental.pallas import tpu as pltpu


def net_kernel(x_ref, w1_ref, b1_ref, w2_ref, b2_ref, o_ref):
    # x_ref : [4, TB] f32  (features on sublanes, batch on lanes)
    # w1_ref: [8]  row-major flat of [in=4, out=2]  (index k*2 + j)
    # b1_ref: [2], w2_ref: [2], b2_ref: [1]   -- all SMEM scalars
    x = x_ref[...]

    # Layer 1: Linear(4 -> 2) + ReLU, fully unrolled on the VPU.
    h = []
    for j in range(2):
        acc = x[0:1, :] * w1_ref[j]
        for k in range(1, 4):
            acc = acc + x[k:k + 1, :] * w1_ref[k * 2 + j]
        h.append(jnp.maximum(acc + b1_ref[j], 0.0))            # (1, TB)

    # Layer 2: Linear(2 -> 1) + ReLU.
    y = h[0] * w2_ref[0] + h[1] * w2_ref[1] + b2_ref[0]
    o_ref[...] = jnp.maximum(y, 0.0)                           # (1, TB) lane-dense store


def _round_up(n, m):
    return ((n + m - 1) // m) * m


def net_forward(x, w1, b1, w2, b2, *, tb=2048):
    """x: [B, 4]; w1: [4, 2] (in, out); b1: [2]; w2: [2, 1]; b2: [1]. Returns [B, 1]."""
    B = x.shape[0]
    tb_eff = min(tb, _round_up(B, 128))       # lane tile, multiple of 128
    Bp = _round_up(B, tb_eff)                 # padded batch (whole number of tiles)

    # Batch-on-lanes layout; zero-pad the batch tail (sliced off afterwards).
    xT = jnp.asarray(x, jnp.float32).T                        # [4, B]
    x_pad = jnp.pad(xT, ((0, 0), (0, Bp - B)))                # [4, Bp]

    w1f = jnp.asarray(w1, jnp.float32).reshape(-1)            # [8]
    b1f = jnp.asarray(b1, jnp.float32).reshape(-1)            # [2]
    w2f = jnp.asarray(w2, jnp.float32).reshape(-1)            # [2]
    b2f = jnp.asarray(b2, jnp.float32).reshape(-1)            # [1]

    smem = pl.BlockSpec(memory_space=pltpu.MemorySpace.SMEM)
    out_padded = pl.pallas_call(
        net_kernel,
        out_shape=jax.ShapeDtypeStruct((1, Bp), jnp.float32),
        grid=(Bp // tb_eff,),
        in_specs=[
            pl.BlockSpec((4, tb_eff), lambda i: (0, i)),      # x batch tile
            smem, smem, smem, smem,                           # params resident in SMEM
        ],
        out_specs=pl.BlockSpec((1, tb_eff), lambda i: (0, i)),
        compiler_params=pltpu.CompilerParams(
            dimension_semantics=("parallel",)),
    )(x_pad, w1f, b1f, w2f, b2f)

    return out_padded[0, :B].reshape(B, 1)                    # back to [B, 1]


def reference_forward(x, w1, b1, w2, b2):
    h = jnp.maximum(x @ w1 + b1, 0.0)
    return jnp.maximum(h @ w2 + b2, 0.0)


if __name__ == "__main__":
    B = 8
    key = jax.random.PRNGKey(0)
    kx, k1, k2, k3, k4 = jax.random.split(key, 5)
    x = jax.random.normal(kx, (B, 4), jnp.float32)
    w1 = jax.random.uniform(k1, (4, 2), jnp.float32, -0.5, 0.5)   # [in=4, out=2]
    b1 = jax.random.uniform(k2, (2,), jnp.float32, -0.5, 0.5)
    w2 = jax.random.uniform(k3, (2, 1), jnp.float32, -0.5, 0.5)   # [in=2, out=1]
    b2 = jax.random.uniform(k4, (1,), jnp.float32, -0.5, 0.5)

    out = net_forward(x, w1, b1, w2, b2)
    out = jax.block_until_ready(out)

    ref = reference_forward(x, w1, b1, w2, b2)
    assert out.shape == (B, 1)
    assert jnp.allclose(out, ref, atol=1e-5, rtol=1e-5)

    print("KERNEL_OK")
</pallas_src>

<mosaic_0001>
module attributes {stable_mosaic.version = 11 : i64} {
  func.func @net_kernel(%arg0: i32, %arg1: memref<4x128xf32, #tpu.memory_space<vmem>>, %arg2: memref<8xf32, #tpu.memory_space<smem>>, %arg3: memref<2xf32, #tpu.memory_space<smem>>, %arg4: memref<2xf32, #tpu.memory_space<smem>>, %arg5: memref<1xf32, #tpu.memory_space<smem>>, %arg6: memref<1x128xf32, #tpu.memory_space<vmem>>) attributes {dimension_semantics = [#tpu.dimension_semantics<parallel>], iteration_bounds = array<i64: 1>, scalar_prefetch = 0 : i64, scratch_operands = 0 : i64, tpu.core_type = #tpu.core_type<tc>, window_params = [{transform_indices = @transform_0, window_bounds = array<i64: 4, 128>}, {transform_indices = @transform_1, window_bounds = array<i64: 8>}, {transform_indices = @transform_2, window_bounds = array<i64: 2>}, {transform_indices = @transform_3, window_bounds = array<i64: 2>}, {transform_indices = @transform_4, window_bounds = array<i64: 1>}, {transform_indices = @transform_5, window_bounds = array<i64: 1, 128>}]} {
    %c0 = arith.constant 0 : index
    %c0_0 = arith.constant 0 : index
    %0 = vector.load %arg1[%c0, %c0_0] : memref<4x128xf32, #tpu.memory_space<vmem>>, vector<4x128xf32>
    %1 = vector.extract_strided_slice %0 {offsets = [0, 0], sizes = [1, 128], strides = [1, 1]} : vector<4x128xf32> to vector<1x128xf32>
    %c0_1 = arith.constant 0 : index
    %2 = memref.load %arg2[%c0_1] : memref<8xf32, #tpu.memory_space<smem>>
    %3 = vector.broadcast %2 : f32 to vector<1x128xf32>
    %4 = arith.mulf %1, %3 : vector<1x128xf32>
    %5 = vector.extract_strided_slice %0 {offsets = [1, 0], sizes = [1, 128], strides = [1, 1]} : vector<4x128xf32> to vector<1x128xf32>
    %c2 = arith.constant 2 : index
    %6 = memref.load %arg2[%c2] : memref<8xf32, #tpu.memory_space<smem>>
    %7 = vector.broadcast %6 : f32 to vector<1x128xf32>
    %8 = arith.mulf %5, %7 : vector<1x128xf32>
    %9 = arith.addf %4, %8 : vector<1x128xf32>
    %10 = vector.extract_strided_slice %0 {offsets = [2, 0], sizes = [1, 128], strides = [1, 1]} : vector<4x128xf32> to vector<1x128xf32>
    %c4 = arith.constant 4 : index
    %11 = memref.load %arg2[%c4] : memref<8xf32, #tpu.memory_space<smem>>
    %12 = vector.broadcast %11 : f32 to vector<1x128xf32>
    %13 = arith.mulf %10, %12 : vector<1x128xf32>
    %14 = arith.addf %9, %13 : vector<1x128xf32>
    %15 = vector.extract_strided_slice %0 {offsets = [3, 0], sizes = [1, 128], strides = [1, 1]} : vector<4x128xf32> to vector<1x128xf32>
    %c6 = arith.constant 6 : index
    %16 = memref.load %arg2[%c6] : memref<8xf32, #tpu.memory_space<smem>>
    %17 = vector.broadcast %16 : f32 to vector<1x128xf32>
    %18 = arith.mulf %15, %17 : vector<1x128xf32>
    %19 = arith.addf %14, %18 : vector<1x128xf32>
    %c0_2 = arith.constant 0 : index
    %20 = memref.load %arg3[%c0_2] : memref<2xf32, #tpu.memory_space<smem>>
    %21 = vector.broadcast %20 : f32 to vector<1x128xf32>
    %22 = arith.addf %19, %21 : vector<1x128xf32>
    %cst = arith.constant 0.000000e+00 : f32
    %23 = vector.broadcast %cst : f32 to vector<1x128xf32>
    %24 = arith.maximumf %22, %23 : vector<1x128xf32>
    %25 = vector.extract_strided_slice %0 {offsets = [0, 0], sizes = [1, 128], strides = [1, 1]} : vector<4x128xf32> to vector<1x128xf32>
    %c1 = arith.constant 1 : index
    %26 = memref.load %arg2[%c1] : memref<8xf32, #tpu.memory_space<smem>>
    %27 = vector.broadcast %26 : f32 to vector<1x128xf32>
    %28 = arith.mulf %25, %27 : vector<1x128xf32>
    %29 = vector.extract_strided_slice %0 {offsets = [1, 0], sizes = [1, 128], strides = [1, 1]} : vector<4x128xf32> to vector<1x128xf32>
    %c3 = arith.constant 3 : index
    %30 = memref.load %arg2[%c3] : memref<8xf32, #tpu.memory_space<smem>>
    %31 = vector.broadcast %30 : f32 to vector<1x128xf32>
    %32 = arith.mulf %29, %31 : vector<1x128xf32>
    %33 = arith.addf %28, %32 : vector<1x128xf32>
    %34 = vector.extract_strided_slice %0 {offsets = [2, 0], sizes = [1, 128], strides = [1, 1]} : vector<4x128xf32> to vector<1x128xf32>
    %c5 = arith.constant 5 : index
    %35 = memref.load %arg2[%c5] : memref<8xf32, #tpu.memory_space<smem>>
    %36 = vector.broadcast %35 : f32 to vector<1x128xf32>
    %37 = arith.mulf %34, %36 : vector<1x128xf32>
    %38 = arith.addf %33, %37 : vector<1x128xf32>
    %39 = vector.extract_strided_slice %0 {offsets = [3, 0], sizes = [1, 128], strides = [1, 1]} : vector<4x128xf32> to vector<1x128xf32>
    %c7 = arith.constant 7 : index
    %40 = memref.load %arg2[%c7] : memref<8xf32, #tpu.memory_space<smem>>
    %41 = vector.broadcast %40 : f32 to vector<1x128xf32>
    %42 = arith.mulf %39, %41 : vector<1x128xf32>
    %43 = arith.addf %38, %42 : vector<1x128xf32>
    %c1_3 = arith.constant 1 : index
    %44 = memref.load %arg3[%c1_3] : memref<2xf32, #tpu.memory_space<smem>>
    %45 = vector.broadcast %44 : f32 to vector<1x128xf32>
    %46 = arith.addf %43, %45 : vector<1x128xf32>
    %cst_4 = arith.constant 0.000000e+00 : f32
    %47 = vector.broadcast %cst_4 : f32 to vector<1x128xf32>
    %48 = arith.maximumf %46, %47 : vector<1x128xf32>
    %c0_5 = arith.constant 0 : index
    %49 = memref.load %arg4[%c0_5] : memref<2xf32, #tpu.memory_space<smem>>
    %50 = vector.broadcast %49 : f32 to vector<1x128xf32>
    %51 = arith.mulf %24, %50 : vector<1x128xf32>
    %c1_6 = arith.constant 1 : index
    %52 = memref.load %arg4[%c1_6] : memref<2xf32, #tpu.memory_space<smem>>
    %53 = vector.broadcast %52 : f32 to vector<1x128xf32>
    %54 = arith.mulf %48, %53 : vector<1x128xf32>
    %55 = arith.addf %51, %54 : vector<1x128xf32>
    %c0_7 = arith.constant 0 : index
    %56 = memref.load %arg5[%c0_7] : memref<1xf32, #tpu.memory_space<smem>>
    %57 = vector.broadcast %56 : f32 to vector<1x128xf32>
    %58 = arith.addf %55, %57 : vector<1x128xf32>
    %cst_8 = arith.constant 0.000000e+00 : f32
    %59 = vector.broadcast %cst_8 : f32 to vector<1x128xf32>
    %60 = arith.maximumf %58, %59 : vector<1x128xf32>
    %c0_9 = arith.constant 0 : index
    %c0_10 = arith.constant 0 : index
    %61 = vector.load %arg6[%c0_9, %c0_10] : memref<1x128xf32, #tpu.memory_space<vmem>>, vector<1x128xf32>
    tpu.vector_store %arg6[%c0_9, %c0_10], %60 {strides = array<i32>} : memref<1x128xf32, #tpu.memory_space<vmem>>, vector<1x128xf32>,
    return
  }
  func.func @transform_0(%arg0: i32) -> (i32, i32) {
    %c0_i32 = arith.constant 0 : i32
    %c0_i32_0 = arith.constant 0 : i32
    return %c0_i32, %arg0 : i32, i32
  }
  func.func @transform_1(%arg0: i32) -> i32 {
    %c0_i32 = arith.constant 0 : i32
    %c0_i32_0 = arith.constant 0 : i32
    return %c0_i32 : i32
  }
  func.func @transform_2(%arg0: i32) -> i32 {
    %c0_i32 = arith.constant 0 : i32
    %c0_i32_0 = arith.constant 0 : i32
    return %c0_i32 : i32
  }
  func.func @transform_3(%arg0: i32) -> i32 {
    %c0_i32 = arith.constant 0 : i32
    %c0_i32_0 = arith.constant 0 : i32
    return %c0_i32 : i32
  }
  func.func @transform_4(%arg0: i32) -> i32 {
    %c0_i32 = arith.constant 0 : i32
    %c0_i32_0 = arith.constant 0 : i32
    return %c0_i32 : i32
  }
  func.func @transform_5(%arg0: i32) -> (i32, i32) {
    %c0_i32 = arith.constant 0 : i32
    %c0_i32_0 = arith.constant 0 : i32
    return %c0_i32, %arg0 : i32, i32
  }
}

</mosaic_0001>

<llo_original>
// kernel: tpu_custom_call.1
$region0: #{tpu_custom_call.1}
  #allocation0 [shape = 'u32[]', space=smem, size = 0x4, offset = 0x4, fixed_abs, tag = 'smem constant byte address 0x4 - core index']
  #allocation1 [shape = 'u32[144,128]{1,0:T(1,128)}', space=vmem, size = 0x12000, scoped, tag = 'internal scratch']
  #allocation2 [shape = 'f32[1]{0:T(128)S(6)}', space=smem, size = 0x200, scoped, tag = 'scoped memory for tpu_custom_call.1']
  %s0 = inlined_call_operand.hbm [shape: f32[4,128], index: 0, kind: input, shape index: {}]
  %s1 = inlined_call_operand.vmem [shape: f32[8], index: 1, kind: input, shape index: {}]
  %s2 = inlined_call_operand.vmem [shape: f32[2], index: 2, kind: input, shape index: {}]
  %s3 = inlined_call_operand.vmem [shape: f32[2], index: 3, kind: input, shape index: {}]
  %s4 = inlined_call_operand.<no memory space> [shape: f32[1], index: 4, kind: input, shape index: {}]
  %s5 = inlined_call_operand.hbm [shape: f32[1,128], index: 5, kind: output, shape index: {}]
  %s6 = sld [smem:[#allocation0]]
  $region46: #{tpu_custom_call.1} parent=0
    _
  %s8 = ssub.s32 1, %s6
  %s9 = scalar_select 0, %s8, %s6
  %10 = sst [smem:[#allocation2]] %s4
  $region1: #{tpu_custom_call.1} parent=0
    #allocation3 [shape = 'u8[2048]{0}', space=vmem, size = 0x800, scoped, tag = 'input window, operand 0, single buffered']
    #allocation4 [shape = 's32[1]{0}', space=sflag, size = 0x4, scoped, tag = 'scoped memory for tpu_custom_call.1']
    #allocation5 [shape = 's32[1]{0}', space=sflag, size = 0x4, scoped, tag = 'scoped memory for tpu_custom_call.1']
    #allocation6 [shape = 's32[1]{0}', space=sflag, size = 0x4, scoped, tag = 'scoped memory for tpu_custom_call.1']
    #allocation7 [shape = 'u8[512]{0}', space=smem, size = 0x200, scoped, tag = 'input window, operand 1, single buffered']
    #allocation8 [shape = 'u8[512]{0}', space=smem, size = 0x200, scoped, tag = 'input window, operand 2, single buffered']
    #allocation9 [shape = 's32[1]{0}', space=sflag, size = 0x4, scoped, tag = 'scoped memory for tpu_custom_call.1']
    #allocation10 [shape = 'u8[512]{0}', space=smem, size = 0x200, scoped, tag = 'input window, operand 3, single buffered']
    #allocation11 [shape = 'u8[512]{0}', space=vmem, size = 0x400, scoped, tag = 'output window, operand 0, single buffered']
    %11 = vsyncpa [#allocation4], 0
    %12 = vsyncpa [#allocation6], 0
    %13 = vsyncpa [#allocation9], 0
    %14 = vsyncpa [#allocation5], 0
    // Predicated region
    $region2: #{tpu_custom_call.1} parent=1 // pred_check
      _
    $region3: #{tpu_custom_call.1} parent=1 // pred_check_branch
      %16 = sbr.rel (0) target = $region5
    $region4: #{tpu_custom_call.1} parent=1 // pred_region
      %s18 = ssub.s32 64, 64
      %19 = vsyncadd [#allocation4], %s18
      %s21 = sshll.u32 [#allocation3], 4
      %s22 = int_to_ptr.vmem [resolvable:$true] %s21
      %24 = dma.hbm_to_vmem [thread:$0]  %s0, 64, %s22, [#allocation4]
    $region5: #{tpu_custom_call.1} parent=1 // pred_fallthru
      _
    // Predicated region
    $region6: #{tpu_custom_call.1} parent=1 // pred_check
      _
    $region7: #{tpu_custom_call.1} parent=1 // pred_check_branch
      %26 = sbr.rel (0) target = $region9
    $region8: #{tpu_custom_call.1} parent=1 // pred_region
      %s28 = ssub.s32 16, 16
      %29 = vsyncadd [#allocation6], %s28
      %s31 = sshll.u32 %s1, 4
      %s32 = int_to_ptr.vmem [resolvable:$true] %s31
      %34 = dma.vmem_to_smem %s32, 16, [#allocation7], [#allocation6]
    $region9: #{tpu_custom_call.1} parent=1 // pred_fallthru
      _
    // Predicated region
    $region10: #{tpu_custom_call.1} parent=1 // pred_check
      _
    $region11: #{tpu_custom_call.1} parent=1 // pred_check_branch
      %36 = sbr.rel (0) target = $region13
    $region12: #{tpu_custom_call.1} parent=1 // pred_region
      %s38 = ssub.s32 16, 16
      %39 = vsyncadd [#allocation9], %s38
      %s41 = sshll.u32 %s2, 4
      %s42 = int_to_ptr.vmem [resolvable:$true] %s41
      %44 = dma.vmem_to_smem %s42, 16, [#allocation8], [#allocation9]
    $region13: #{tpu_custom_call.1} parent=1 // pred_fallthru
      _
    // Predicated region
    $region14: #{tpu_custom_call.1} parent=1 // pred_check
      _
    $region15: #{tpu_custom_call.1} parent=1 // pred_check_branch
      %46 = sbr.rel (0) target = $region17
    $region16: #{tpu_custom_call.1} parent=1 // pred_region
      %s48 = ssub.s32 16, 16
      %49 = vsyncadd [#allocation9], %s48
      %s51 = sshll.u32 %s3, 4
      %s52 = int_to_ptr.vmem [resolvable:$true] %s51
      %54 = dma.vmem_to_smem %s52, 16, [#allocation10], [#allocation9]
    $region17: #{tpu_custom_call.1} parent=1 // pred_fallthru
      _
    // Predicated region
    $region18: #{tpu_custom_call.1} parent=1 // pred_check
      _
    $region19: #{tpu_custom_call.1} parent=1 // pred_check_branch
      %56 = sbr.rel (0) target = $region21
    $region20: #{tpu_custom_call.1} parent=1 // pred_region
      _
    $region21: #{tpu_custom_call.1} parent=1 // pred_fallthru
      _
    // Predicated region
    $region22: #{tpu_custom_call.1} parent=1 // pred_check
      _
    $region23: #{tpu_custom_call.1} parent=1 // pred_check_branch
      %58 = sbr.rel (0) target = $region25
    $region24: #{tpu_custom_call.1} parent=1 // pred_region
      %59 = dma.done [#allocation4], 64
    $region25: #{tpu_custom_call.1} parent=1 // pred_fallthru
      _
    // Predicated region
    $region26: #{tpu_custom_call.1} parent=1 // pred_check
      _
    $region27: #{tpu_custom_call.1} parent=1 // pred_check_branch
      %61 = sbr.rel (0) target = $region29
    $region28: #{tpu_custom_call.1} parent=1 // pred_region
      %62 = dma.done [#allocation6], 16
    $region29: #{tpu_custom_call.1} parent=1 // pred_fallthru
      _
    // Predicated region
    $region30: #{tpu_custom_call.1} parent=1 // pred_check
      _
    $region31: #{tpu_custom_call.1} parent=1 // pred_check_branch
      %64 = sbr.rel (0) target = $region33
    $region32: #{tpu_custom_call.1} parent=1 // pred_region
      %65 = dma.done [#allocation9], 16
    $region33: #{tpu_custom_call.1} parent=1 // pred_fallthru
      _
    // Predicated region
    $region34: #{tpu_custom_call.1} parent=1 // pred_check
      _
    $region35: #{tpu_custom_call.1} parent=1 // pred_check_branch
      %67 = sbr.rel (0) target = $region37
    $region36: #{tpu_custom_call.1} parent=1 // pred_region
      %68 = dma.done [#allocation9], 16
    $region37: #{tpu_custom_call.1} parent=1 // pred_fallthru
      _
    %69 = sfence
    %v70 = vld [vmem:[#allocation3] sm:$0xf]
    %s71 = sld [smem:[#allocation7]]
    %v72 = vstv %s71
    %v73 = vmul.f32 %v70, %v72
    %s74 = sld [smem:[#allocation7 + $0x2]]
    %v75 = vstv %s74
    %v76 = vmul.f32 %v70, %v75
    %v78 = vrot.slane %v76, 1
    %v80 = vadd.f32 %v73, %v78
    %s81 = sld [smem:[#allocation7 + $0x4]]
    %v82 = vstv %s81
    %v83 = vmul.f32 %v70, %v82
    %v85 = vrot.slane %v83, 2
    %v87 = vadd.f32 %v80, %v85
    %s88 = sld [smem:[#allocation7 + $0x6]]
    %v89 = vstv %s88
    %v90 = vmul.f32 %v70, %v89
    %v92 = vrot.slane %v90, 3
    %v94 = vadd.f32 %v87, %v92
    %s95 = sld [smem:[#allocation8]]
    %v96 = vstv %s95
    %v97 = vadd.f32 %v94, %v96
    %v98 = vmax.f32 %v97, 0.0
    %s99 = sld [smem:[#allocation7 + $0x1]]
    %v100 = vstv %s99
    %v101 = vmul.f32 %v70, %v100
    %s102 = sld [smem:[#allocation7 + $0x3]]
    %v103 = vstv %s102
    %v104 = vmul.f32 %v70, %v103
    %v106 = vrot.slane %v104, 1
    %v108 = vadd.f32 %v101, %v106
    %s109 = sld [smem:[#allocation7 + $0x5]]
    %v110 = vstv %s109
    %v111 = vmul.f32 %v70, %v110
    %v113 = vrot.slane %v111, 2
    %v115 = vadd.f32 %v108, %v113
    %s116 = sld [smem:[#allocation7 + $0x7]]
    %v117 = vstv %s116
    %v118 = vmul.f32 %v70, %v117
    %v120 = vrot.slane %v118, 3
    %v122 = vadd.f32 %v115, %v120
    %s123 = sld [smem:[#allocation8 + $0x1]]
    %v124 = vstv %s123
    %v125 = vadd.f32 %v122, %v124
    %v126 = vmax.f32 %v125, 0.0
    %s127 = sld [smem:[#allocation10]]
    %v128 = vstv %s127
    %v129 = vmul.f32 %v98, %v128
    %s130 = sld [smem:[#allocation10 + $0x1]]
    %v131 = vstv %s130
    %v132 = vmul.f32 %v126, %v131
    %v133 = vadd.f32 %v129, %v132
    %s134 = sld [smem:[#allocation2]]
    %v135 = vstv %s134
    %v136 = vadd.f32 %v133, %v135
    %v137 = vmax.f32 %v136, 0.0
    %138 = vst [vmem:[#allocation11] sm:$0x1] %v137
    // Predicated region
    $region38: #{tpu_custom_call.1} parent=1 // pred_check
      _
    $region39: #{tpu_custom_call.1} parent=1 // pred_check_branch
      %140 = sbr.rel (0) target = $region41
    $region40: #{tpu_custom_call.1} parent=1 // pred_region
      %s142 = ssub.s32 16, 16
      %143 = vsyncadd [#allocation5], %s142
      %s145 = sshll.u32 [#allocation11], 4
      %s146 = int_to_ptr.vmem [resolvable:$true] %s145
      %148 = dma.vmem_to_hbm [thread:$0]  %s146, 16, %s5, [#allocation5]
    $region41: #{tpu_custom_call.1} parent=1 // pred_fallthru
      _
    // Predicated region
    $region42: #{tpu_custom_call.1} parent=1 // pred_check
      _
    $region43: #{tpu_custom_call.1} parent=1 // pred_check_branch
      %150 = sbr.rel (0) target = $region45
    $region44: #{tpu_custom_call.1} parent=1 // pred_region
      %151 = dma.done [#allocation5], 16
    $region45: #{tpu_custom_call.1} parent=1 // pred_fallthru
      _
    %152 = vsyncpa [#allocation4], 1
    %153 = vsyncpa [#allocation5], 1
    %154 = vsyncpa [#allocation6], 1
    %155 = vsyncpa [#allocation9], 1

</llo_original>
